<compile_context>
chip_gen: v7x
topology: tpu7x:2x2x1
jax: 0.10.0
libtpu: 0.0.40
codegen_flags: <defaults>
</compile_context>

<pallas_src>
import jax
import jax.numpy as jnp
from jax.experimental import pallas as pl
from jax.experimental.pallas import tpu as pltpu


def _round_up(x: int, m: int) -> int:
    return (x + m - 1) // m * m


def _vmem_capacity_bytes() -> int:
    # Generation-aware physical VMEM (v5e/v6e: 128 MiB, v7x: 64 MiB per TensorCore).
    try:
        info = pltpu.get_tpu_info()
        cap = int(getattr(info, "vmem_capacity_bytes"))
        if cap > 0:
            return cap
    except Exception:
        pass
    return 64 * 1024 * 1024  # conservative fallback = v7x per-TC VMEM


def _linear_block_kernel(x_ref, w_ref, s_ref, b_ref, o_ref):
    # x_ref: (n_blk, C_in, t_hw)   activation tile (spatial on the lane axis)
    # w_ref: (C_out, C_in)         conv weight (grid-invariant)
    # s_ref: (C_out, 1) f32        folded BN scale  = gamma / sqrt(var + eps)
    # b_ref: (C_out, 1) f32        folded BN bias   = beta - mean * scale
    # o_ref: (n_blk, C_out, t_hw)  lane-dense output tile
    w = w_ref[...]
    s = s_ref[...]
    b = b_ref[...]
    for n in range(x_ref.shape[0]):  # small static unroll (n_blk <= 8)
        acc = jnp.dot(w, x_ref[n], preferred_element_type=jnp.float32)  # MXU, f32 acc
        o_ref[n] = (acc * s + b).astype(o_ref.dtype)                    # f32 epilogue


def linear_block(x_nchw, conv_w, bn_gamma, bn_beta, bn_mean, bn_var,
                 *, eps=1e-5, t_hw=4096):
    """Forward of Linear_block: 1x1 conv (bias=False, groups=1) + eval-mode BatchNorm2d.

    x_nchw: (N, C_in, H, W), f32 or bf16.  bf16 is recommended: the kernel is purely
            HBM-bound (especially on v5e), so halving activation/output bytes is a
            near-2x wall-clock win; accumulation and the BN epilogue stay f32.
    conv_w: (C_out, C_in, 1, 1) in PyTorch layout.
    """
    N, C_in, H, W = x_nchw.shape
    C_out = conv_w.shape[0]
    HW = H * W

    in_dtype = x_nchw.dtype
    out_dtype = x_nchw.dtype
    in_b = jnp.dtype(in_dtype).itemsize
    out_b = jnp.dtype(out_dtype).itemsize

    # ---- Fold BN (inference) into per-output-channel f32 scale & bias -----------
    #   y = scale * (W @ x) + (beta - mean * scale),  scale = gamma / sqrt(var + eps)
    scale = (bn_gamma.astype(jnp.float32)
             / jnp.sqrt(bn_var.astype(jnp.float32) + eps)).reshape(C_out, 1)
    bias = (bn_beta.astype(jnp.float32).reshape(C_out, 1)
            - bn_mean.astype(jnp.float32).reshape(C_out, 1) * scale)
    w2d = conv_w.reshape(C_out, C_in).astype(in_dtype)

    # ---- Layout: free reshape, channels on sublanes, spatial on lanes -----------
    x3 = x_nchw.reshape(N, C_in, HW)
    HW_eff = HW
    # Small, lane-ragged feature maps: pad once so every store is unmasked and
    # lane-dense.  Large ragged maps keep Pallas' edge masking (relative waste is
    # tiny and a pad would cost a full extra pass over x).
    if HW % 128 != 0 and HW < 1024:
        HW_eff = _round_up(HW, 128)
        x3 = jnp.pad(x3, ((0, 0), (0, 0), (0, HW_eff - HW)))

    # ---- Tile selection ----------------------------------------------------------
    vmem_cap = _vmem_capacity_bytes()
    vmem_budget = int(vmem_cap * 0.65)     # headroom for Mosaic internals

    def _est_vmem(nb, t):
        x_tile = nb * C_in * t * in_b
        o_tile = nb * C_out * t * out_b
        invariants = C_out * (C_in * in_b + 8)   # weight + f32 scale + f32 bias
        acc = 2 * C_out * t * 4                  # f32 dot result + pre-store cast temp
        return 2 * (x_tile + o_tile) + 2 * invariants + acc

    # Spatial tile: as many 128-lane groups as the budget allows (per-step overhead
    # is ~0.35 us, so bigger tiles push HBM utilization toward roofline).
    t_hw = min(_round_up(max(int(t_hw), 128), 128), _round_up(HW_eff, 128))
    while _est_vmem(1, t_hw) > vmem_budget and t_hw > 128:
        t_hw -= 128

    # Batch several images per grid step when the spatial tile alone is small
    # (late face-model layers), targeting >= ~2 MiB of x+out bytes per step.
    target_step_bytes = 2 * 1024 * 1024
    per_lane_bytes = C_in * in_b + C_out * out_b
    n_blk = 1
    for d in range(2, min(N, 8) + 1):
        if N % d != 0:
            continue
        if _est_vmem(d, t_hw) > vmem_budget:
            break
        if n_blk * t_hw * per_lane_bytes >= target_step_bytes:
            break
        n_blk = d

    # Megacore: keep >= 2 parallel grid steps when possible so v7x's two
    # TensorCores both get work.
    if pl.cdiv(N, n_blk) * pl.cdiv(HW_eff, t_hw) < 2:
        if N >= 2:
            n_blk = max(d for d in range(1, N // 2 + 1) if N % d == 0)
        elif HW_eff > 128:
            t_hw = max(128, _round_up(pl.cdiv(HW_eff, 2), 128))
    # TODO(synk): when N == 1 and HW is tiny, a third parallel C_out grid axis would
    #             balance v7x's two TensorCores better than splitting the spatial tile.

    grid = (pl.cdiv(N, n_blk), pl.cdiv(HW_eff, t_hw))

    flops = 2 * N * HW_eff * C_in * C_out
    bytes_accessed = (N * C_in * HW_eff * in_b + C_out * C_in * in_b
                      + 2 * C_out * 4 + N * C_out * HW_eff * out_b)
    cost = pl.CostEstimate(flops=int(flops), transcendentals=0,
                           bytes_accessed=int(bytes_accessed))

    out3 = pl.pallas_call(
        _linear_block_kernel,
        out_shape=jax.ShapeDtypeStruct((N, C_out, HW_eff), out_dtype),
        grid=grid,
        in_specs=[
            pl.BlockSpec((n_blk, C_in, t_hw), lambda n, j: (n, 0, j)),  # x tile
            pl.BlockSpec((C_out, C_in), lambda n, j: (0, 0)),           # weight
            pl.BlockSpec((C_out, 1), lambda n, j: (0, 0)),              # BN scale (f32)
            pl.BlockSpec((C_out, 1), lambda n, j: (0, 0)),              # BN bias  (f32)
        ],
        out_specs=pl.BlockSpec((n_blk, C_out, t_hw), lambda n, j: (n, 0, j)),
        compiler_params=pltpu.CompilerParams(
            dimension_semantics=("parallel", "parallel"),
            vmem_limit_bytes=int(vmem_cap * 0.8),
        ),
        cost_estimate=cost,
    )(x3, w2d, scale, bias)

    if HW_eff != HW:
        out3 = out3[:, :, :HW]
    return out3.reshape(N, C_out, H, W)


if __name__ == "__main__":
    # Small shapes consistent with the module's forward.
    N, C_in, C_out, H, W = 2, 4, 8, 16, 16

    key = jax.random.PRNGKey(0)
    kx, kw, kg, kb, km, kv = jax.random.split(key, 6)

    x = jax.random.normal(kx, (N, C_in, H, W), dtype=jnp.float32)
    conv_w = jax.random.normal(kw, (C_out, C_in, 1, 1), dtype=jnp.float32) * 0.1
    bn_gamma = 1.0 + 0.1 * jax.random.normal(kg, (C_out,), dtype=jnp.float32)
    bn_beta = 0.1 * jax.random.normal(kb, (C_out,), dtype=jnp.float32)
    bn_mean = 0.05 * jax.random.normal(km, (C_out,), dtype=jnp.float32)
    bn_var = jnp.abs(1.0 + 0.1 * jax.random.normal(kv, (C_out,), dtype=jnp.float32))

    # Pure-JAX reference (1x1 conv == einsum over channels, then eval-mode BN).
    ref = jnp.einsum("nchw,oc->nohw", x, conv_w.reshape(C_out, C_in))
    ref = (ref - bn_mean[None, :, None, None]) / jnp.sqrt(bn_var + 1e-5)[None, :, None, None]
    ref = ref * bn_gamma[None, :, None, None] + bn_beta[None, :, None, None]

    # f32 path: strict check.
    out = linear_block(x, conv_w, bn_gamma, bn_beta, bn_mean, bn_var)
    out = jax.block_until_ready(out)
    assert out.shape == (N, C_out, H, W)
    assert jnp.allclose(out, ref, atol=1e-4, rtol=1e-4)

    # bf16 activation path (halves HBM traffic; f32 MXU accumulation + f32 BN epilogue).
    out_bf16 = linear_block(x.astype(jnp.bfloat16), conv_w,
                            bn_gamma, bn_beta, bn_mean, bn_var)
    out_bf16 = jax.block_until_ready(out_bf16)
    assert out_bf16.shape == (N, C_out, H, W)
    assert jnp.allclose(out_bf16.astype(jnp.float32), ref, atol=5e-2, rtol=5e-2)

    # Ragged small-spatial path (exercises the pad-to-128 + N-batching branch).
    H2 = W2 = 7
    x2 = jax.random.normal(kx, (N, C_in, H2, W2), dtype=jnp.float32)
    ref2 = jnp.einsum("nchw,oc->nohw", x2, conv_w.reshape(C_out, C_in))
    ref2 = (ref2 - bn_mean[None, :, None, None]) / jnp.sqrt(bn_var + 1e-5)[None, :, None, None]
    ref2 = ref2 * bn_gamma[None, :, None, None] + bn_beta[None, :, None, None]
    out2 = jax.block_until_ready(
        linear_block(x2, conv_w, bn_gamma, bn_beta, bn_mean, bn_var))
    assert out2.shape == (N, C_out, H2, W2)
    assert jnp.allclose(out2, ref2, atol=1e-4, rtol=1e-4)

    print("KERNEL_OK")
</pallas_src>

<mosaic_0001>
module attributes {stable_mosaic.version = 11 : i64} {
  func.func @_linear_block_kernel(%arg0: i32, %arg1: i32, %arg2: memref<1x4x256xf32, #tpu.memory_space<vmem>>, %arg3: memref<8x4xf32, #tpu.memory_space<vmem>>, %arg4: memref<8x1xf32, #tpu.memory_space<vmem>>, %arg5: memref<8x1xf32, #tpu.memory_space<vmem>>, %arg6: memref<1x8x256xf32, #tpu.memory_space<vmem>>) attributes {dimension_semantics = [#tpu.dimension_semantics<parallel>, #tpu.dimension_semantics<parallel>], iteration_bounds = array<i64: 2, 1>, scalar_prefetch = 0 : i64, scratch_operands = 0 : i64, tpu.core_type = #tpu.core_type<tc>, window_params = [{transform_indices = @transform_0, window_bounds = array<i64: 1, 4, 256>}, {pipeline_mode = #tpu.pipeline_mode<synchronous>, transform_indices = @transform_1, window_bounds = array<i64: 8, 4>}, {pipeline_mode = #tpu.pipeline_mode<synchronous>, transform_indices = @transform_2, window_bounds = array<i64: 8, 1>}, {pipeline_mode = #tpu.pipeline_mode<synchronous>, transform_indices = @transform_3, window_bounds = array<i64: 8, 1>}, {transform_indices = @transform_4, window_bounds = array<i64: 1, 8, 256>}]} {
    %c0 = arith.constant 0 : index
    %c0_0 = arith.constant 0 : index
    %0 = vector.load %arg3[%c0, %c0_0] : memref<8x4xf32, #tpu.memory_space<vmem>>, vector<8x4xf32>
    %c0_1 = arith.constant 0 : index
    %c0_2 = arith.constant 0 : index
    %1 = vector.load %arg4[%c0_1, %c0_2] : memref<8x1xf32, #tpu.memory_space<vmem>>, vector<8x1xf32>
    %c0_3 = arith.constant 0 : index
    %c0_4 = arith.constant 0 : index
    %2 = vector.load %arg5[%c0_3, %c0_4] : memref<8x1xf32, #tpu.memory_space<vmem>>, vector<8x1xf32>
    %c0_5 = arith.constant 0 : index
    %c0_6 = arith.constant 0 : index
    %c0_7 = arith.constant 0 : index
    %3 = vector.load %arg2[%c0_5, %c0_6, %c0_7] : memref<1x4x256xf32, #tpu.memory_space<vmem>>, vector<1x4x256xf32>
    %4 = vector.shape_cast %3 : vector<1x4x256xf32> to vector<4x256xf32>
    %cst = arith.constant dense<0.000000e+00> : vector<8x256xf32>
    %5 = tpu.matmul %0, %4, %cst {dimension_numbers = #tpu.dot_dimension_numbers<[1], [0], [0], [1], [0, 0, 1, 1], [], []>} : vector<8x4xf32>, vector<4x256xf32>, vector<8x256xf32> -> vector<8x256xf32>
    %6 = vector.broadcast %1 : vector<8x1xf32> to vector<8x256xf32>
    %7 = arith.mulf %5, %6 : vector<8x256xf32>
    %8 = vector.broadcast %2 : vector<8x1xf32> to vector<8x256xf32>
    %9 = arith.addf %7, %8 : vector<8x256xf32>
    %c0_8 = arith.constant 0 : index
    %c0_9 = arith.constant 0 : index
    %c0_10 = arith.constant 0 : index
    %10 = vector.load %arg6[%c0_8, %c0_9, %c0_10] : memref<1x8x256xf32, #tpu.memory_space<vmem>>, vector<1x8x256xf32>
    %11 = vector.shape_cast %10 : vector<1x8x256xf32> to vector<8x256xf32>
    %12 = vector.shape_cast %9 : vector<8x256xf32> to vector<1x8x256xf32>
    tpu.vector_store %arg6[%c0_8, %c0_9, %c0_10], %12 {strides = array<i32>} : memref<1x8x256xf32, #tpu.memory_space<vmem>>, vector<1x8x256xf32>,
    return
  }
  func.func @transform_0(%arg0: i32, %arg1: i32) -> (i32, i32, i32) {
    %c0_i32 = arith.constant 0 : i32
    %c0_i32_0 = arith.constant 0 : i32
    return %arg0, %c0_i32, %arg1 : i32, i32, i32
  }
  func.func @transform_1(%arg0: i32, %arg1: i32) -> (i32, i32) {
    %c0_i32 = arith.constant 0 : i32
    %c0_i32_0 = arith.constant 0 : i32
    %c0_i32_1 = arith.constant 0 : i32
    return %c0_i32, %c0_i32_0 : i32, i32
  }
  func.func @transform_2(%arg0: i32, %arg1: i32) -> (i32, i32) {
    %c0_i32 = arith.constant 0 : i32
    %c0_i32_0 = arith.constant 0 : i32
    %c0_i32_1 = arith.constant 0 : i32
    return %c0_i32, %c0_i32_0 : i32, i32
  }
  func.func @transform_3(%arg0: i32, %arg1: i32) -> (i32, i32) {
    %c0_i32 = arith.constant 0 : i32
    %c0_i32_0 = arith.constant 0 : i32
    %c0_i32_1 = arith.constant 0 : i32
    return %c0_i32, %c0_i32_0 : i32, i32
  }
  func.func @transform_4(%arg0: i32, %arg1: i32) -> (i32, i32, i32) {
    %c0_i32 = arith.constant 0 : i32
    %c0_i32_0 = arith.constant 0 : i32
    return %arg0, %c0_i32, %arg1 : i32, i32, i32
  }
}

</mosaic_0001>

<llo_original>
// kernel: tpu_custom_call.1
$region0: #{tpu_custom_call.1}
  #allocation0 [shape = 'u32[]', space=smem, size = 0x4, offset = 0x4, fixed_abs, tag = 'smem constant byte address 0x4 - core index']
  #allocation1 [shape = 'u32[144,128]{1,0:T(1,128)}', space=vmem, size = 0x12000, scoped, tag = 'internal scratch']
  %s0 = inlined_call_operand.vmem [shape: f32[2,4,256], index: 0, kind: input, shape index: {}]
  %s1 = inlined_call_operand.vmem [shape: f32[8,4], index: 1, kind: input, shape index: {}]
  %s2 = inlined_call_operand.vmem [shape: f32[8,1], index: 2, kind: input, shape index: {}]
  %s3 = inlined_call_operand.vmem [shape: f32[8,1], index: 3, kind: input, shape index: {}]
  %s4 = inlined_call_operand.hbm [shape: f32[2,8,256], index: 4, kind: output, shape index: {}]
  %s5 = sld [smem:[#allocation0]]
  $region49: #{tpu_custom_call.1} parent=0
    _
  %s7 = ssub.s32 1, %s5
  %s8 = scalar_select 0, %s7, %s5
  $region1: #{tpu_custom_call.1} parent=0
    #allocation2 [shape = 'u8[16384]{0}', space=vmem, size = 0x4000, scoped, tag = 'output window, operand 0']
    #allocation3 [shape = 's32[2]{0}', space=sflag, size = 0x8, scoped, tag = 'scoped memory for tpu_custom_call.1']
    %9 = vsyncpa [#allocation3], 0
    %s10 = scalar_lea.sflag [#allocation3], 1
    %11 = vsyncpa %s10, 0
    loop: start=0, step=1, limit=4
    $region2: #{tpu_custom_call.1} parent=1 // loop_pre_header
      _
    $region3: #{tpu_custom_call.1} parent=1 // loop_header
      %s13 = sphi 0, %s17
      %p14 = scmp.ge.s32.totalorder %s13, 4
      %s20 = sphi 0, %s32
      %s21 = sphi 0, %s28
      %s22 = sphi 0, %s20
      %s23 = sphi 0, %s21
      %s24 = sphi 0, %s22
      %s25 = sphi 0, %s23
      %s37 = sphi 0, %s39
      %s40 = sphi 0, %s37
      %s41 = sphi 0, %s40
      %s57 = sphi 0, %s41
      %s61 = sphi 0, %s61
      %s63 = sphi 0, %s61
      %s64 = sphi 0, %s63
      %s78 = sphi 0, %s64
      %s82 = sphi 0, %s82
      %s84 = sphi 0, %s82
      %s85 = sphi 0, %s84
      %s99 = sphi 0, %s85
      %s103 = sphi 0, %s103
      %s105 = sphi 0, %s103
      %s106 = sphi 0, %s105
      %s120 = sphi 0, %s106
      %s128 = sphi 0, %s130
      %s131 = sphi 0, %s128
      %s132 = sphi 0, %s131
      %s148 = sphi 0, %s132
    $region4: #{tpu_custom_call.1} parent=1 // loop_header_branch
      %16 = sbr.rel (%p14) target = $region8
    $region5: #{tpu_custom_call.1} parent=1 // loop_body
      %s18 = ssub.s32 %s13, 1
      %s19 = ssub.s32 %s13, 2
      %s26 = sadd.s32 1, %s21
      %p27 = scmp.ge.s32.totalorder %s26, 1
      %s28 = scalar_select %p27, 0, %s26
      %s29 = sadd.s32 1, %s20
      %s30 = scalar_select %p27, %s29, %s20
      %p31 = scmp.ge.s32.totalorder %s30, 2
      %s32 = scalar_select %p31, 0, %s30
      %s33 = ssub.s32 %s20, %s32
      %s34 = ssub.s32 %s21, %s28
      %s35 = sor.u32 %s33, %s34
      %p36 = scmp.eq.s32.totalorder %s35, 0
      %s38 = sadd.s32 %s37, 1
      %s39 = scalar_select %p36, %s37, %s38
      %p42 = pneg %p36
      %p43 = scmp.eq.s32.totalorder %s13, 1
      %p44 = por %p42, %p43
      %p45 = scmp.ne.s32.totalorder %s37, %s40
      %p46 = scmp.eq.s32.totalorder %s13, 0
      %p47 = por %p45, %p46
      %p48 = scmp.ne.s32.totalorder %s37, %s40
      %p49 = scmp.eq.s32.totalorder %s18, 1
      %p50 = por %p48, %p49
      %p51 = scmp.ne.s32.totalorder %s40, %s41
      %p52 = scmp.eq.s32.totalorder %s18, 0
      %p53 = por %p51, %p52
      %p54 = scmp.ne.s32.totalorder %s40, %s41
      %p55 = scmp.eq.s32.totalorder %s19, 1
      %p56 = por %p54, %p55
      %p58 = scmp.ne.s32.totalorder %s41, %s57
      %p59 = scmp.eq.s32.totalorder %s19, 0
      %p60 = por %p58, %p59
      %s62 = sadd.s32 %s61, 1
      %p65 = scmp.eq.s32.totalorder %s13, 1
      %p66 = scmp.ne.s32.totalorder %s61, %s63
      %p67 = scmp.eq.s32.totalorder %s13, 0
      %p68 = por %p66, %p67
      %p69 = scmp.ne.s32.totalorder %s61, %s63
      %p70 = scmp.eq.s32.totalorder %s18, 1
      %p71 = por %p69, %p70
      %p72 = scmp.ne.s32.totalorder %s63, %s64
      %p73 = scmp.eq.s32.totalorder %s18, 0
      %p74 = por %p72, %p73
      %p75 = scmp.ne.s32.totalorder %s63, %s64
      %p76 = scmp.eq.s32.totalorder %s19, 1
      %p77 = por %p75, %p76
      %p79 = scmp.ne.s32.totalorder %s64, %s78
      %p80 = scmp.eq.s32.totalorder %s19, 0
      %p81 = por %p79, %p80
      %s83 = sadd.s32 %s82, 1
      %p86 = scmp.eq.s32.totalorder %s13, 1
      %p87 = scmp.ne.s32.totalorder %s82, %s84
      %p88 = scmp.eq.s32.totalorder %s13, 0
      %p89 = por %p87, %p88
      %p90 = scmp.ne.s32.totalorder %s82, %s84
      %p91 = scmp.eq.s32.totalorder %s18, 1
      %p92 = por %p90, %p91
      %p93 = scmp.ne.s32.totalorder %s84, %s85
      %p94 = scmp.eq.s32.totalorder %s18, 0
      %p95 = por %p93, %p94
      %p96 = scmp.ne.s32.totalorder %s84, %s85
      %p97 = scmp.eq.s32.totalorder %s19, 1
      %p98 = por %p96, %p97
      %p100 = scmp.ne.s32.totalorder %s85, %s99
      %p101 = scmp.eq.s32.totalorder %s19, 0
      %p102 = por %p100, %p101
      %s104 = sadd.s32 %s103, 1
      %p107 = scmp.eq.s32.totalorder %s13, 1
      %p108 = scmp.ne.s32.totalorder %s103, %s105
      %p109 = scmp.eq.s32.totalorder %s13, 0
      %p110 = por %p108, %p109
      %p111 = scmp.ne.s32.totalorder %s103, %s105
      %p112 = scmp.eq.s32.totalorder %s18, 1
      %p113 = por %p111, %p112
      %p114 = scmp.ne.s32.totalorder %s105, %s106
      %p115 = scmp.eq.s32.totalorder %s18, 0
      %p116 = por %p114, %p115
      %p117 = scmp.ne.s32.totalorder %s105, %s106
      %p118 = scmp.eq.s32.totalorder %s19, 1
      %p119 = por %p117, %p118
      %p121 = scmp.ne.s32.totalorder %s106, %s120
      %p122 = scmp.eq.s32.totalorder %s19, 0
      %p123 = por %p121, %p122
      %s124 = ssub.s32 %s20, %s32
      %s125 = ssub.s32 %s21, %s28
      %s126 = sor.u32 %s124, %s125
      %p127 = scmp.eq.s32.totalorder %s126, 0
      %s129 = sadd.s32 %s128, 1
      %s130 = scalar_select %p127, %s128, %s129
      %p133 = pneg %p127
      %p134 = scmp.eq.s32.totalorder %s13, 1
      %p135 = por %p133, %p134
      %p136 = scmp.ne.s32.totalorder %s128, %s131
      %p137 = scmp.eq.s32.totalorder %s13, 0
      %p138 = por %p136, %p137
      %p139 = scmp.ne.s32.totalorder %s128, %s131
      %p140 = scmp.eq.s32.totalorder %s18, 1
      %p141 = por %p139, %p140
      %p142 = scmp.ne.s32.totalorder %s131, %s132
      %p143 = scmp.eq.s32.totalorder %s18, 0
      %p144 = por %p142, %p143
      %p145 = scmp.ne.s32.totalorder %s131, %s132
      %p146 = scmp.eq.s32.totalorder %s19, 1
      %p147 = por %p145, %p146
      %p149 = scmp.ne.s32.totalorder %s132, %s148
      %p150 = scmp.eq.s32.totalorder %s19, 0
      %p151 = por %p149, %p150
      %p152 = scmp.le.s32.totalorder 1, %s13
      %p153 = scmp.lt.s32.totalorder %s13, 3
      %p154 = pnand %p152, %p153
      %p155 = pneg %p154
      // Predicated region
      $region9: #{tpu_custom_call.1} parent=5 // pred_check
        _
      $region10: #{tpu_custom_call.1} parent=5 // pred_check_branch
        %157 = sbr.rel (%p154) target = $region12
      $region11: #{tpu_custom_call.1} parent=5 // pred_region
        %s158 = ssub.s32 %s13, 1
        // Predicated region
        $region13: #{tpu_custom_call.1} parent=11 // pred_check
          %p159 = pneg %p74
        $region14: #{tpu_custom_call.1} parent=11 // pred_check_branch
          %161 = sbr.rel (%p159) target = $region16
        $region15: #{tpu_custom_call.1} parent=11 // pred_region
          _
        $region16: #{tpu_custom_call.1} parent=11 // pred_fallthru
          _
        // Predicated region
        $region17: #{tpu_custom_call.1} parent=11 // pred_check
          %p162 = pneg %p95
        $region18: #{tpu_custom_call.1} parent=11 // pred_check_branch
          %164 = sbr.rel (%p162) target = $region20
        $region19: #{tpu_custom_call.1} parent=11 // pred_region
          _
        $region20: #{tpu_custom_call.1} parent=11 // pred_fallthru
          _
        // Predicated region
        $region21: #{tpu_custom_call.1} parent=11 // pred_check
          %p165 = pneg %p116
        $region22: #{tpu_custom_call.1} parent=11 // pred_check_branch
          %167 = sbr.rel (%p165) target = $region24
        $region23: #{tpu_custom_call.1} parent=11 // pred_region
          _
        $region24: #{tpu_custom_call.1} parent=11 // pred_fallthru
          _
      $region12: #{tpu_custom_call.1} parent=5 // pred_fallthru
        _
      %p168 = scmp.lt.s32.totalorder %s13, 2
      // Predicated region
      $region25: #{tpu_custom_call.1} parent=5 // pred_check
        %p169 = pneg %p168
      $region26: #{tpu_custom_call.1} parent=5 // pred_check_branch
        %171 = sbr.rel (%p169) target = $region28
      $region27: #{tpu_custom_call.1} parent=5 // pred_region
        // Predicated region
        $region29: #{tpu_custom_call.1} parent=27 // pred_check
          %p172 = pneg %p47
        $region30: #{tpu_custom_call.1} parent=27 // pred_check_branch
          %174 = sbr.rel (%p172) target = $region32
        $region31: #{tpu_custom_call.1} parent=27 // pred_region
          %s175 = smul.u32 2, %s21
          %p176 = scmp.lt.s32.totalorder %s20, 1
          %s177 = scalar_select %p176, %s20, 1
          %p178 = scmp.lt.s32.totalorder %s175, 1
          %s179 = scalar_select %p178, %s175, 1
          %s180 = smul.addr %s177, 2
          %s181 = sadd.s32 %s179, %s180
          %s182 = smul.addr %s181, 4
          %s183 = scalar_lea.vmem %s0, %s182
          %s184 = smul.u32 2, %s21
        $region32: #{tpu_custom_call.1} parent=27 // pred_fallthru
          _
      $region28: #{tpu_custom_call.1} parent=5 // pred_fallthru
        _
      %p185 = scmp.le.s32.totalorder 1, %s13
      %p186 = scmp.lt.s32.totalorder %s13, 3
      %p187 = pnand %p185, %p186
      %p188 = pneg %p187
      // Predicated region
      $region33: #{tpu_custom_call.1} parent=5 // pred_check
        _
      $region34: #{tpu_custom_call.1} parent=5 // pred_check_branch
        %190 = sbr.rel (%p187) target = $region36
      $region35: #{tpu_custom_call.1} parent=5 // pred_region
        %s191 = ssub.s32 %s13, 1
        %s192 = smul.u32 2, %s23
        %p193 = scmp.lt.s32.totalorder %s22, 1
        %s194 = scalar_select %p193, %s22, 1
        %p195 = scmp.lt.s32.totalorder %s192, 1
        %s196 = scalar_select %p195, %s192, 1
        %s197 = smul.addr %s194, 2
        %s198 = sadd.s32 %s196, %s197
        %s199 = smul.addr %s198, 4
        %s200 = scalar_lea.vmem %s0, %s199
        %p201 = pneg %p53
        %p202 = pneg %p50
        %p203 = pneg %p74
        %p204 = pneg %p71
        %p205 = pneg %p95
        %p206 = pneg %p92
        %p207 = pneg %p116
        %p208 = pneg %p113
        %p209 = pneg %p144
        %p210 = pneg %p141
        %s211 = sand.u32 %s131, 1
        %s212 = scalar_lea.sflag [#allocation3], %s211
        %s213 = sand.u32 %s131, 1
        %s214 = smul.addr %s213, 16
        %s215 = scalar_lea.vmem [#allocation2], %s214
        %s216 = smul.u32 2, %s23
        %p217 = scmp.lt.s32.totalorder %s22, 1
        %s218 = scalar_select %p217, %s22, 1
        %p219 = scmp.lt.s32.totalorder %s216, 1
        %s220 = scalar_select %p219, %s216, 1
        %s221 = smul.addr %s218, 2
        %s222 = sadd.s32 %s220, %s221
        %s223 = smul.addr %s222, 4
        %s224 = scalar_lea.vmem %s0, %s223
        %s225 = smul.u32 2, %s23
        %s226 = smul.u32 2, %s23
        %v227 = vld [vmem:[%s1] sm:$0xff]
        %v228 = vld [vmem:[%s2] sm:$0xff]
        %v229 = vld [vmem:[%s3] sm:$0xff]
        %v230 = vld [vmem:[%s224] sm:$0xff]
        %v232 = vcombine.high %v230, %v230
        %vm233 = vcmask 31744
        %v235 = vsel %vm233, %v227, 0
        %vm237 = vcmask 1043456
        %v238 = vsel %vm237, %v230, 0
        %v240 = vsel %vm237, %v232, 0
        %242 = vmatprep.subr.mxu0 %v240
        %243 = vmatpush1.msra.mxu0 %v238
        %244 = vmatprep.subr.mxu0 0.0
        %245 = vmatpush1.msra.mxu0 0.0
        %246 = vmatprep.subr.mxu0 0.0
        %247 = vmatpush1.msra.mxu0 0.0
        %248 = vmatprep.subr.mxu0 0.0
        %249 = vmatpush1.msra.mxu0 0.0
        %250 = vmatprep.subr.mxu0 0.0
        %251 = vmatpush1.msra.mxu0 0.0
        %252 = vmatprep.subr.mxu0 0.0
        %253 = vmatpush1.msra.mxu0 0.0
        %254 = vmatprep.subr.mxu0 0.0
        %255 = vmatpush1.msra.mxu0 0.0
        %256 = vmatprep.subr.mxu0 0.0
        %257 = vmatpush1.msra.mxu0 0.0
        %258 = vmatprep.subr.mxu0 0.0
        %259 = vmatpush1.msra.mxu0 0.0
        %260 = vmatprep.subr.mxu0 0.0
        %261 = vmatpush1.msra.mxu0 0.0
        %262 = vmatprep.subr.mxu0 0.0
        %263 = vmatpush1.msra.mxu0 0.0
        %264 = vmatprep.subr.mxu0 0.0
        %265 = vmatpush1.msra.mxu0 0.0
        %266 = vmatprep.subr.mxu0 0.0
        %267 = vmatpush1.msra.mxu0 0.0
        %268 = vmatprep.subr.mxu0 0.0
        %269 = vmatpush1.msra.mxu0 0.0
        %270 = vmatprep.subr.mxu0 0.0
        %271 = vmatpush1.msra.mxu0 0.0
        %272 = vmatprep.subr.mxu0 0.0
        %273 = vmatpush1.msra.mxu0 0.0
        %274 = vmatprep.subr.mxu0 0.0
        %275 = vmatpush1.msra.mxu0 0.0
        %276 = vmatprep.subr.mxu0 0.0
        %277 = vmatpush1.msra.mxu0 0.0
        %278 = vmatprep.subr.mxu0 0.0
        %279 = vmatpush1.msra.mxu0 0.0
        %280 = vmatprep.subr.mxu0 0.0
        %281 = vmatpush1.msra.mxu0 0.0
        %282 = vmatprep.subr.mxu0 0.0
        %283 = vmatpush1.msra.mxu0 0.0
        %284 = vmatprep.subr.mxu0 0.0
        %285 = vmatpush1.msra.mxu0 0.0
        %286 = vmatprep.subr.mxu0 0.0
        %287 = vmatpush1.msra.mxu0 0.0
        %288 = vmatprep.subr.mxu0 0.0
        %289 = vmatpush1.msra.mxu0 0.0
        %290 = vmatprep.subr.mxu0 0.0
        %291 = vmatpush1.msra.mxu0 0.0
        %292 = vmatprep.subr.mxu0 0.0
        %293 = vmatpush1.msra.mxu0 0.0
        %294 = vmatprep.subr.mxu0 0.0
        %295 = vmatpush1.msra.mxu0 0.0
        %296 = vmatprep.subr.mxu0 0.0
        %297 = vmatpush1.msra.mxu0 0.0
        %298 = vmatprep.subr.mxu0 0.0
        %299 = vmatpush1.msra.mxu0 0.0
        %300 = vmatprep.subr.mxu0 0.0
        %301 = vmatpush1.msra.mxu0 0.0
        %302 = vmatprep.subr.mxu0 0.0
        %303 = vmatpush1.msra.mxu0 0.0
        %304 = vmatprep.subr.mxu0 0.0
        %305 = vmatpush1.msra.mxu0 0.0
        %306 = vmatprep.mubr.f32.mxu0 0.0
        %307 = vmatmul.mubr.f32.gmra.mrb[0].mxu0 %v235
        %v308 = vpop.f32.mrb[0].mxu0
        %v309 = vadd.f32 0.0, %v308
        %v310 = vpop.f32.mrb[0].mxu0
        %v311 = vadd.f32 0.0, %v310
        %312 = vdwg.mxu0
        %314 = vset.pattern.permute.xlu0 0
        %315 = vperm.xlu0 %314, %v228
        %v316 = vpop.permute.xlu0 %315
        %v318 = vmul.f32 %v309, %v316
        %v319 = vmul.f32 %v311, %v316
        %321 = vset.pattern.permute.xlu0 0
        %322 = vperm.xlu0 %321, %v229
        %v323 = vpop.permute.xlu0 %322
        %v325 = vadd.f32 %v318, %v323
        %v326 = vadd.f32 %v319, %v323
        %327 = vst [vmem:[%s215] sm:$0xff] %v325
        %328 = vst [vmem:[%s215 + $0x8] sm:$0xff] %v326
        %s329 = sand.u32 %s131, 1
        %s330 = scalar_lea.sflag [#allocation3], %s329
        %s331 = sand.u32 %s131, 1
        %s332 = smul.addr %s331, 16
        %s333 = scalar_lea.vmem [#allocation2], %s332
        // Predicated region
        $region37: #{tpu_custom_call.1} parent=35 // pred_check
          %p334 = pneg %p141
        $region38: #{tpu_custom_call.1} parent=35 // pred_check_branch
          %336 = sbr.rel (%p334) target = $region40
        $region39: #{tpu_custom_call.1} parent=35 // pred_region
          %s337 = smul.u32 2, %s23
          %s339 = ssub.s32 256, 256
          %340 = vsyncadd %s330, %s339
          %s341 = smul.addr %s22, 2
          %s342 = sadd.s32 %s337, %s341
          %s343 = smul.addr %s342, 128
          %s344 = scalar_lea.hbm %s4, %s343
          %s346 = sshll.u32 %s333, 4
          %s347 = int_to_ptr.vmem [resolvable:$true] %s346
          %349 = dma.vmem_to_hbm [thread:$0]  %s347, 256, %s344, %s330
        $region40: #{tpu_custom_call.1} parent=35 // pred_fallthru
          _
      $region36: #{tpu_custom_call.1} parent=5 // pred_fallthru
        _
      %p350 = scmp.le.s32.totalorder 2, %s13
      // Predicated region
      $region41: #{tpu_custom_call.1} parent=5 // pred_check
        %p351 = pneg %p350
      $region42: #{tpu_custom_call.1} parent=5 // pred_check_branch
        %353 = sbr.rel (%p351) target = $region44
      $region43: #{tpu_custom_call.1} parent=5 // pred_region
        %s354 = ssub.s32 %s13, 2
        // Predicated region
        $region45: #{tpu_custom_call.1} parent=43 // pred_check
          %p355 = pneg %p147
        $region46: #{tpu_custom_call.1} parent=43 // pred_check_branch
          %357 = sbr.rel (%p355) target = $region48
        $region47: #{tpu_custom_call.1} parent=43 // pred_region
          %s358 = sand.u32 %s132, 1
          %s359 = scalar_lea.sflag [#allocation3], %s358
          %s360 = sand.u32 %s132, 1
          %s361 = smul.addr %s360, 16
          %s362 = scalar_lea.vmem [#allocation2], %s361
          %363 = dma.done %s359, 256
        $region48: #{tpu_custom_call.1} parent=43 // pred_fallthru
          _
      $region44: #{tpu_custom_call.1} parent=5 // pred_fallthru
        _
    $region6: #{tpu_custom_call.1} parent=1 // loop_footer
      %s17 = sadd.s32 1, %s13
    $region7: #{tpu_custom_call.1} parent=1 // loop_footer_branch
      %12 = sbr.rel target = $region3
    $region8: #{tpu_custom_call.1} parent=1 // loop_exit
      _
    %364 = vsyncpa [#allocation3], 1
    %s365 = scalar_lea.sflag [#allocation3], 1
    %366 = vsyncpa %s365, 1

</llo_original>
